<compile_context>
chip_gen: v5e
topology: v5e:2x2
jax: 0.10.0
libtpu: 0.0.40
codegen_flags: <defaults>
</compile_context>

<pallas_src>
import jax
import jax.numpy as jnp
from jax.experimental import pallas as pl
from jax.experimental.pallas import tpu as pltpu

_LANE = 128
_MAX_ROW_BYTES = 64 * 1024           # cap on one slab row's width (bytes)
_RAGGED_CHUNK_BYTES = 512 * 1024     # per-DMA chunk for the ragged fallback


def _sublane_multiple(dtype):
    itemsize = jnp.dtype(dtype).itemsize
    # 8 sublanes per vreg at 32-bit; sub-32-bit dtypes pack 16/32 rows.
    return max(8, 32 // max(1, itemsize))


def _chip_tuning():
    """(tile_bytes, vmem_limit_bytes) selected from the chip's VMEM size."""
    try:
        cap = int(getattr(pltpu.get_tpu_info(), "vmem_capacity_bytes", 0))
    except Exception:
        cap = 0
    if cap >= 96 * 1024 * 1024:
        # v5e / v6e: 128 MiB VMEM -> bigger blocks amortize per-step overhead.
        return 8 * 1024 * 1024, 64 * 1024 * 1024
    # v7x (64 MiB physical VMEM) or unknown chip: stay comfortably inside.
    return 6 * 1024 * 1024, 40 * 1024 * 1024


def _copy_kernel(x_ref, o_ref):
    # Identity copy of the current tile (the only "compute" a view has).
    o_ref[...] = x_ref[...]


def _copy_lane_aligned(x_flat):
    """Streaming Pallas copy of a flat buffer whose length is a multiple of 128."""
    total = x_flat.size
    dtype = x_flat.dtype
    itemsize = jnp.dtype(dtype).itemsize
    sub = _sublane_multiple(dtype)
    tile_bytes, vmem_limit = _chip_tuning()

    # Widest power-of-two lane count (multiple of 128) that divides the buffer
    # and keeps a single row under _MAX_ROW_BYTES: unmasked full-width stores,
    # few / large DMA descriptors.
    max_lanes = max(_LANE, (_MAX_ROW_BYTES // itemsize) // _LANE * _LANE)
    lanes = _LANE
    while lanes * 2 <= max_lanes and total % (lanes * 2) == 0:
        lanes *= 2
    rows = total // lanes

    # Row tile straight from the byte budget (no divisor search, no collapse);
    # the partial trailing block is masked by Pallas -> no padding needed.
    if rows <= sub:
        tile_rows = rows                      # equals full dim -> allowed
    else:
        budget = max(1, tile_bytes // (lanes * itemsize))
        tile_rows = max(sub, (min(rows, budget) // sub) * sub)
        # Guarantee >=2 grid steps so the "parallel" grid can land one block
        # on each of v7x's two TensorCores (harmless on single-TC v5e/v6e).
        if pl.cdiv(rows, tile_rows) < 2:
            half = ((rows + 1) // 2 + sub - 1) // sub * sub
            tile_rows = max(sub, min(tile_rows, half))
    num_blocks = pl.cdiv(rows, tile_rows)

    out2d = pl.pallas_call(
        _copy_kernel,
        out_shape=jax.ShapeDtypeStruct((rows, lanes), dtype),
        grid=(num_blocks,),
        in_specs=[pl.BlockSpec((tile_rows, lanes), lambda i: (i, 0))],
        out_specs=pl.BlockSpec((tile_rows, lanes), lambda i: (i, 0)),
        compiler_params=pltpu.CompilerParams(
            dimension_semantics=("parallel",),
            vmem_limit_bytes=vmem_limit,
        ),
        cost_estimate=pl.CostEstimate(
            flops=0, transcendentals=0, bytes_accessed=2 * total * itemsize),
    )(jnp.reshape(x_flat, (rows, lanes)))
    return jnp.reshape(out2d, (total,))


def _make_ragged_kernel(chunk, n_full, tail):
    """Manual double-buffered HBM->VMEM->HBM streaming copy (static tail DMA)."""

    def kernel(x_hbm, o_hbm, buf, in_sem, out_sem):
        def in_copy(i, slot, size):
            return pltpu.make_async_copy(
                x_hbm.at[pl.ds(i * chunk, size)],
                buf.at[slot, pl.ds(0, size)],
                in_sem.at[slot])

        def out_copy(i, slot, size):
            return pltpu.make_async_copy(
                buf.at[slot, pl.ds(0, size)],
                o_hbm.at[pl.ds(i * chunk, size)],
                out_sem.at[slot])

        if n_full > 0:
            @pl.loop(0, n_full)
            def _(i):
                slot = i % 2

                # Slot is reused every 2 steps: its previous writeback must be
                # done before the next inbound DMA overwrites it.
                @pl.when(i >= 2)
                def _():
                    out_copy(i - 2, slot, chunk).wait()

                in_copy(i, slot, chunk).start()      # overlaps out(i-1) on other slot
                in_copy(i, slot, chunk).wait()
                out_copy(i, slot, chunk).start()

            # Drain outstanding writebacks (n_full is a static Python int).
            if n_full >= 2:
                out_copy(n_full - 2, (n_full - 2) % 2, chunk).wait()
            out_copy(n_full - 1, (n_full - 1) % 2, chunk).wait()

        if tail > 0:
            # Tail size is static at trace time -> a single small DMA pair.
            in_copy(n_full, 0, tail).start()
            in_copy(n_full, 0, tail).wait()
            out_copy(n_full, 0, tail).start()
            out_copy(n_full, 0, tail).wait()

    return kernel


def _copy_ragged(x_flat):
    """Pallas copy for flat lengths that are not a multiple of 128 (rare path)."""
    total = x_flat.size
    dtype = x_flat.dtype
    itemsize = jnp.dtype(dtype).itemsize
    _, vmem_limit = _chip_tuning()

    chunk = max(_LANE, (_RAGGED_CHUNK_BYTES // itemsize) // _LANE * _LANE)
    chunk = min(chunk, ((total + _LANE - 1) // _LANE) * _LANE)  # bound scratch
    n_full = total // chunk
    tail = total - n_full * chunk

    return pl.pallas_call(
        _make_ragged_kernel(chunk, n_full, tail),
        out_shape=jax.ShapeDtypeStruct((total,), dtype),
        in_specs=[pl.BlockSpec(memory_space=pl.ANY)],
        out_specs=pl.BlockSpec(memory_space=pl.ANY),
        scratch_shapes=[
            pltpu.VMEM((2, chunk), dtype),
            pltpu.SemaphoreType.DMA((2,)),
            pltpu.SemaphoreType.DMA((2,)),
        ],
        compiler_params=pltpu.CompilerParams(vmem_limit_bytes=vmem_limit),
        cost_estimate=pl.CostEstimate(
            flops=0, transcendentals=0, bytes_accessed=2 * total * itemsize),
    )(x_flat)


def pallas_view(x, dim, shape, materialize=False):
    """Pallas equivalent of View(dim, shape).forward(x).

    torch.view on a contiguous tensor is metadata-only, so the DEFAULT here is
    a zero-copy jnp.reshape (identical semantics, no HBM traffic).  Pass
    materialize=True to route the buffer through the tuned Pallas streaming
    copy kernel; note that the materialized result does not alias the input.
    """
    if dim < 0:
        dim += x.ndim
    new_shape = list(x.shape)[:dim] + list(shape) + list(x.shape)[dim + 1:]
    if not materialize or x.size == 0:
        return jnp.reshape(x, new_shape)

    x_flat = jnp.reshape(x, (x.size,))          # bitcast, no data movement
    if x.size % _LANE == 0:
        flat = _copy_lane_aligned(x_flat)
    else:
        flat = _copy_ragged(x_flat)
    return jnp.reshape(flat, new_shape)


if __name__ == "__main__":
    # Example consistent with a VAE-style use of View:
    # input x: (2, 4, 16, 16) NCHW; View(dim=1, shape=(2, 2)) -> (2, 2, 2, 16, 16)
    key = jax.random.PRNGKey(0)
    x = jax.random.normal(key, (2, 4, 16, 16), dtype=jnp.float32)

    dim = 1
    shape = (2, 2)
    expected_shape = tuple(list(x.shape)[:dim] + list(shape) + list(x.shape)[dim + 1:])
    ref = jnp.reshape(x, expected_shape)

    # Materializing path: runs the Pallas streaming-copy kernel once.
    out = jax.block_until_ready(pallas_view(x, dim, shape, materialize=True))
    assert out.shape == expected_shape, (out.shape, expected_shape)
    assert jnp.array_equal(out, ref)

    # Default (zero-copy) path for parity.
    out2 = jax.block_until_ready(pallas_view(x, dim, shape))
    assert out2.shape == expected_shape
    assert jnp.array_equal(out2, ref)

    print("KERNEL_OK")
</pallas_src>

<mosaic_0001>
module attributes {stable_mosaic.version = 11 : i64} {
  func.func @_copy_kernel(%arg0: i32, %arg1: memref<1x2048xf32, #tpu.memory_space<vmem>>, %arg2: memref<1x2048xf32, #tpu.memory_space<vmem>>) attributes {dimension_semantics = [#tpu.dimension_semantics<parallel>], iteration_bounds = array<i64: 1>, scalar_prefetch = 0 : i64, scratch_operands = 0 : i64, tpu.core_type = #tpu.core_type<tc>, window_params = [{transform_indices = @transform_0, window_bounds = array<i64: 1, 2048>}, {transform_indices = @transform_1, window_bounds = array<i64: 1, 2048>}]} {
    %c0 = arith.constant 0 : index
    %c0_0 = arith.constant 0 : index
    %0 = vector.load %arg1[%c0, %c0_0] : memref<1x2048xf32, #tpu.memory_space<vmem>>, vector<1x2048xf32>
    %c0_1 = arith.constant 0 : index
    %c0_2 = arith.constant 0 : index
    %1 = vector.load %arg2[%c0_1, %c0_2] : memref<1x2048xf32, #tpu.memory_space<vmem>>, vector<1x2048xf32>
    tpu.vector_store %arg2[%c0_1, %c0_2], %0 {strides = array<i32>} : memref<1x2048xf32, #tpu.memory_space<vmem>>, vector<1x2048xf32>,
    return
  }
  func.func @transform_0(%arg0: i32) -> (i32, i32) {
    %c0_i32 = arith.constant 0 : i32
    %c0_i32_0 = arith.constant 0 : i32
    return %arg0, %c0_i32 : i32, i32
  }
  func.func @transform_1(%arg0: i32) -> (i32, i32) {
    %c0_i32 = arith.constant 0 : i32
    %c0_i32_0 = arith.constant 0 : i32
    return %arg0, %c0_i32 : i32, i32
  }
}

</mosaic_0001>

<llo_original>
// kernel: tpu_custom_call.1
$region0: #{tpu_custom_call.1}
  #allocation0 [shape = 'u32[]', space=smem, size = 0x4, offset = 0x4, fixed_abs, tag = 'smem constant byte address 0x4 - core index']
  #allocation1 [shape = 'u32[72,128]{1,0:T(1,128)}', space=vmem, size = 0x9000, scoped, tag = 'internal scratch']
  %s0 = inlined_call_operand.hbm [shape: f32[1,2048], index: 0, kind: input, shape index: {}]
  %s1 = inlined_call_operand.hbm [shape: f32[1,2048], index: 1, kind: output, shape index: {}]
  %s2 = sld [smem:[#allocation0]]
  $region18: #{tpu_custom_call.1} parent=0
    _
  %s4 = ssub.s32 1, %s2
  %s5 = scalar_select 0, %s4, %s2
  $region1: #{tpu_custom_call.1} parent=0
    #allocation2 [shape = 'u8[8192]{0}', space=vmem, size = 0x2000, scoped, tag = 'input window, operand 0, single buffered']
    #allocation3 [shape = 's32[1]{0}', space=sflag, size = 0x4, scoped, tag = 'scoped memory for tpu_custom_call.1']
    #allocation4 [shape = 's32[1]{0}', space=sflag, size = 0x4, scoped, tag = 'scoped memory for tpu_custom_call.1']
    #allocation5 [shape = 'u8[8192]{0}', space=vmem, size = 0x2000, scoped, tag = 'output window, operand 0, single buffered']
    %6 = vsyncpa [#allocation3], 0
    %7 = vsyncpa [#allocation4], 0
    // Predicated region
    $region2: #{tpu_custom_call.1} parent=1 // pred_check
      _
    $region3: #{tpu_custom_call.1} parent=1 // pred_check_branch
      %9 = sbr.rel (0) target = $region5
    $region4: #{tpu_custom_call.1} parent=1 // pred_region
      %11 = vsyncadd [#allocation3], 0
      %s13 = sshll.u32 %s0, 4
      %s14 = int_to_ptr.hbm [resolvable:$true] %s13
      %s15 = sshll.u32 [#allocation2], 4
      %s16 = int_to_ptr.vmem [resolvable:$true] %s15
      %18 = dma.hbm_to_vmem [thread:$0]  %s14, 256, %s16, [#allocation3]
    $region5: #{tpu_custom_call.1} parent=1 // pred_fallthru
      _
    // Predicated region
    $region6: #{tpu_custom_call.1} parent=1 // pred_check
      _
    $region7: #{tpu_custom_call.1} parent=1 // pred_check_branch
      %20 = sbr.rel (0) target = $region9
    $region8: #{tpu_custom_call.1} parent=1 // pred_region
      %22 = dma.done [#allocation3], 256
    $region9: #{tpu_custom_call.1} parent=1 // pred_fallthru
      _
    %v23 = vld [vmem:[#allocation2] sm:$0xff]
    %v24 = vld [vmem:[#allocation2 + $0x8] sm:$0xff]
    %25 = vst [vmem:[#allocation5] sm:$0xff] %v23
    %26 = vst [vmem:[#allocation5 + $0x8] sm:$0xff] %v24
    // Predicated region
    $region10: #{tpu_custom_call.1} parent=1 // pred_check
      _
    $region11: #{tpu_custom_call.1} parent=1 // pred_check_branch
      %28 = sbr.rel (0) target = $region13
    $region12: #{tpu_custom_call.1} parent=1 // pred_region
      %30 = vsyncadd [#allocation4], 0
      %s32 = sshll.u32 [#allocation5], 4
      %s33 = int_to_ptr.vmem [resolvable:$true] %s32
      %s34 = sshll.u32 %s1, 4
      %s35 = int_to_ptr.hbm [resolvable:$true] %s34
      %37 = dma.vmem_to_hbm [thread:$0]  %s33, 256, %s35, [#allocation4]
    $region13: #{tpu_custom_call.1} parent=1 // pred_fallthru
      _
    // Predicated region
    $region14: #{tpu_custom_call.1} parent=1 // pred_check
      _
    $region15: #{tpu_custom_call.1} parent=1 // pred_check_branch
      %39 = sbr.rel (0) target = $region17
    $region16: #{tpu_custom_call.1} parent=1 // pred_region
      %41 = dma.done [#allocation4], 256
    $region17: #{tpu_custom_call.1} parent=1 // pred_fallthru
      _
    %42 = vsyncpa [#allocation3], 1
    %43 = vsyncpa [#allocation4], 1

</llo_original>
